<compile_context>
chip_gen: v7x
topology: tpu7x:2x2x1
jax: 0.10.0
libtpu: 0.0.40
codegen_flags: <defaults>
</compile_context>

<pallas_src>
import math

import jax
import jax.numpy as jnp
from jax.experimental import pallas as pl
from jax.experimental.pallas import tpu as pltpu


def _round_up(x: int, m: int) -> int:
    return -(-x // m) * m


# Double-buffered working-set budget (bytes).  Safe inside the scoped-VMEM
# defaults on v5e (16 MiB), v6e (32 MiB) and v7x (32 MiB of 64 MiB physical).
_VMEM_WORKING_SET_BUDGET = 14 * 1024 * 1024
_VMEM_LIMIT_BYTES = 32 * 1024 * 1024


# ---------------------------------------------------------------------------
# Kernels
# ---------------------------------------------------------------------------
def _unembed_kernel_fused(x_ref, w_ref, b_ref, o_ref):
    # x_ref: (tm, K) bf16   w_ref: (K, tn) bf16   b_ref: (1, tn) f32
    # Full-K panel: one MXU matmul per (i, j) tile; bias added in f32; a single
    # cast on the way out.  No accumulator scratch, no K grid axis.
    o_ref[...] = (
        jnp.dot(x_ref[...], w_ref[...], preferred_element_type=jnp.float32)
        + b_ref[...]
    ).astype(o_ref.dtype)


def _unembed_kernel_ktiled(x_ref, w_ref, b_ref, o_ref, acc_ref):
    # Fallback for d_model too large to fold into a single VMEM panel.
    @pl.when(pl.program_id(2) == 0)
    def _init():
        acc_ref[...] = jnp.zeros_like(acc_ref)

    acc_ref[...] += jnp.dot(
        x_ref[...], w_ref[...], preferred_element_type=jnp.float32
    )

    @pl.when(pl.program_id(2) == pl.num_programs(2) - 1)
    def _finalize():
        o_ref[...] = (acc_ref[...] + b_ref[...]).astype(o_ref.dtype)


# ---------------------------------------------------------------------------
# Tile selection
# ---------------------------------------------------------------------------
def _select_tiles_fused(M, K, V, comp_bytes, out_bytes, budget):
    """Pick (tm, tn) for the folded-K path minimizing streamed HBM bytes while
    keeping the double-buffered working set under `budget`.  None if no fit."""
    m8 = _round_up(max(M, 1), 8)
    tm_cands = sorted(
        {t for t in (512, 256, 128, 64, 32, 16, 8) if t <= m8} | {min(512, m8)},
        reverse=True,
    )
    tn_cands = [t for t in (2048, 1024, 512, 256, 128) if t <= _round_up(V, 128)]
    if not tn_cands:
        tn_cands = [_round_up(V, 128)]

    best = None
    for tm in tm_cands:
        for tn in tn_cands:
            # Double-buffered x / W_U / out tiles + bias (f32).
            ws = 2 * (
                tm * K * comp_bytes
                + K * tn * comp_bytes
                + tm * tn * out_bytes
                + tn * 4
            )
            if ws > budget:
                continue
            mp = _round_up(max(M, 1), tm)
            vp = _round_up(V, tn)
            traffic = (K * vp * comp_bytes) * (mp // tm)   # W_U re-read per row block
            traffic += (mp * K * comp_bytes) * (vp // tn)  # x re-read per vocab block
            traffic += mp * vp * out_bytes                 # logits writeback
            if best is None or traffic < best[0]:
                best = (traffic, tm, tn)
    return None if best is None else (best[1], best[2])


def _select_tiles_ktiled(M, K, V, comp_bytes, out_bytes, budget):
    """Fallback tiles (tm, tn, tk) for the K-tiled accumulator path."""
    m8 = _round_up(max(M, 1), 8)
    for tk in (2048, 1024, 512, 256, 128):
        for tm in (256, 128, 64, 32, 16, 8):
            if tm > m8:
                continue
            for tn in (1024, 512, 256, 128):
                ws = (
                    2 * (tm * tk * comp_bytes + tk * tn * comp_bytes
                         + tm * tn * out_bytes + tn * 4)
                    + tm * tn * 4  # f32 accumulator scratch
                )
                if ws <= budget:
                    return tm, tn, tk
    return 8, 128, 128  # minimal legal tiles; always fits in practice


# ---------------------------------------------------------------------------
# Wrapper
# ---------------------------------------------------------------------------
def unembed(
    x: jax.Array,
    W_U: jax.Array,
    b_U: jax.Array,
    *,
    compute_dtype=jnp.bfloat16,
    out_dtype=None,
) -> jax.Array:
    """Pallas implementation of Unembed.forward.

    x:   (..., d_model), W_U: (d_model, d_vocab), b_U: (d_vocab,)
    Returns (..., d_vocab) in `out_dtype` (default: x.dtype).
    Operands are streamed in `compute_dtype` (default bf16) with f32 MXU
    accumulation; pass compute_dtype=None to keep the input dtype.
    """
    *lead, d_model = x.shape
    d_model_w, d_vocab = W_U.shape
    assert d_model == d_model_w, "d_model mismatch between input and W_U"
    assert b_U.shape == (d_vocab,)

    out_dtype = x.dtype if out_dtype is None else out_dtype
    compute_dtype = x.dtype if compute_dtype is None else compute_dtype
    comp_bytes = jnp.dtype(compute_dtype).itemsize
    out_bytes = jnp.dtype(out_dtype).itemsize

    M = math.prod(lead) if lead else 1
    x2 = x.reshape(M, d_model).astype(compute_dtype)
    w = W_U.astype(compute_dtype)
    b2 = b_U.reshape(1, d_vocab).astype(jnp.float32)  # bias added in f32

    tiles = _select_tiles_fused(
        M, d_model, d_vocab, comp_bytes, out_bytes, _VMEM_WORKING_SET_BUDGET
    )

    if tiles is not None:
        # ------------------------- folded-K path (primary) -----------------
        tm, tn = tiles
        Mp = _round_up(max(M, 1), tm)
        Vp = _round_up(d_vocab, tn)
        if Mp != M:
            x2 = jnp.pad(x2, ((0, Mp - M), (0, 0)))
        if Vp != d_vocab:
            w = jnp.pad(w, ((0, 0), (0, Vp - d_vocab)))
            b2 = jnp.pad(b2, ((0, 0), (0, Vp - d_vocab)))

        grid = (Mp // tm, Vp // tn)
        cost = pl.CostEstimate(
            flops=2 * Mp * d_model * Vp,
            transcendentals=0,
            bytes_accessed=(
                Mp * d_model * comp_bytes
                + d_model * Vp * comp_bytes
                + Vp * 4
                + Mp * Vp * out_bytes
            ),
        )
        out2 = pl.pallas_call(
            _unembed_kernel_fused,
            out_shape=jax.ShapeDtypeStruct((Mp, Vp), out_dtype),
            grid_spec=pltpu.PrefetchScalarGridSpec(
                num_scalar_prefetch=0,
                grid=grid,
                in_specs=[
                    # x depends only on i: re-DMA'd once per row block.
                    pl.BlockSpec((tm, d_model), lambda i, j: (i, 0)),
                    pl.BlockSpec((d_model, tn), lambda i, j: (0, j)),
                    pl.BlockSpec((1, tn), lambda i, j: (0, j)),
                ],
                out_specs=pl.BlockSpec((tm, tn), lambda i, j: (i, j)),
            ),
            compiler_params=pltpu.CompilerParams(
                # Both axes parallel: vocab axis shards across v7x's 2 TCs.
                dimension_semantics=("parallel", "parallel"),
                vmem_limit_bytes=_VMEM_LIMIT_BYTES,
            ),
            cost_estimate=cost,
        )(x2, w, b2)
    else:
        # ---------------- K-tiled fallback (huge d_model only) -------------
        tm, tn, tk = _select_tiles_ktiled(
            M, d_model, d_vocab, comp_bytes, out_bytes, _VMEM_WORKING_SET_BUDGET
        )
        Mp = _round_up(max(M, 1), tm)
        Vp = _round_up(d_vocab, tn)
        Kp = _round_up(d_model, tk)
        if Mp != M or Kp != d_model:
            x2 = jnp.pad(x2, ((0, Mp - M), (0, Kp - d_model)))
        if Kp != d_model or Vp != d_vocab:
            w = jnp.pad(w, ((0, Kp - d_model), (0, Vp - d_vocab)))
        if Vp != d_vocab:
            b2 = jnp.pad(b2, ((0, 0), (0, Vp - d_vocab)))

        grid = (Mp // tm, Vp // tn, Kp // tk)
        cost = pl.CostEstimate(
            flops=2 * Mp * Kp * Vp,
            transcendentals=0,
            bytes_accessed=(
                Mp * Kp * comp_bytes
                + Kp * Vp * comp_bytes
                + Vp * 4
                + Mp * Vp * out_bytes
            ),
        )
        out2 = pl.pallas_call(
            _unembed_kernel_ktiled,
            out_shape=jax.ShapeDtypeStruct((Mp, Vp), out_dtype),
            grid_spec=pltpu.PrefetchScalarGridSpec(
                num_scalar_prefetch=0,
                grid=grid,
                in_specs=[
                    pl.BlockSpec((tm, tk), lambda i, j, k: (i, k)),
                    pl.BlockSpec((tk, tn), lambda i, j, k: (k, j)),
                    pl.BlockSpec((1, tn), lambda i, j, k: (0, j)),
                ],
                out_specs=pl.BlockSpec((tm, tn), lambda i, j, k: (i, j)),
                scratch_shapes=[pltpu.VMEM((tm, tn), jnp.float32)],
            ),
            compiler_params=pltpu.CompilerParams(
                dimension_semantics=("parallel", "parallel", "arbitrary"),
                vmem_limit_bytes=_VMEM_LIMIT_BYTES,
            ),
            cost_estimate=cost,
        )(x2, w, b2)

    return out2[:M, :d_vocab].reshape(*lead, d_vocab)


# ---------------------------------------------------------------------------
# Self-test
# ---------------------------------------------------------------------------
if __name__ == "__main__":
    key = jax.random.PRNGKey(0)
    k_w, k_x, k_w2, k_x2 = jax.random.split(key, 4)

    # --- Test 1: bf16 activations/weights (typical transformer unembed) ----
    d_model, d_vocab, init_std = 128, 256, 0.02
    batch, seq_len = 2, 8
    W_U = (init_std * jax.random.normal(k_w, (d_model, d_vocab), dtype=jnp.float32)
           ).astype(jnp.bfloat16)
    b_U = jnp.zeros((d_vocab,), dtype=jnp.float32)
    x = jax.random.normal(k_x, (batch, seq_len, d_model), dtype=jnp.float32
                          ).astype(jnp.bfloat16)

    out = jax.block_until_ready(unembed(x, W_U, b_U))
    ref = (jnp.dot(x.astype(jnp.float32), W_U.astype(jnp.float32),
                   preferred_element_type=jnp.float32)
           + b_U).astype(x.dtype)
    assert out.shape == (batch, seq_len, d_vocab)
    assert out.dtype == x.dtype
    assert jnp.allclose(out.astype(jnp.float32), ref.astype(jnp.float32),
                        atol=1e-2, rtol=1e-2), "Pallas output mismatch (test 1)"

    # --- Test 2: f32 inputs, ragged vocab (exercises row + vocab padding) --
    d_model2, d_vocab2 = 128, 300
    batch2, seq_len2 = 3, 5
    W_U2 = (0.02 * jax.random.normal(k_w2, (d_model2, d_vocab2))).astype(jnp.float32)
    b_U2 = jnp.zeros((d_vocab2,), dtype=jnp.float32)
    x2 = jax.random.normal(k_x2, (batch2, seq_len2, d_model2), dtype=jnp.float32)

    out2 = jax.block_until_ready(unembed(x2, W_U2, b_U2))
    # Same-precision reference (bf16 operands, f32 accumulation).
    ref2_bf16 = jnp.dot(x2.astype(jnp.bfloat16).astype(jnp.float32),
                        W_U2.astype(jnp.bfloat16).astype(jnp.float32),
                        preferred_element_type=jnp.float32) + b_U2
    # Full-precision reference (module semantics), looser tolerance.
    ref2_f32 = jnp.dot(x2, W_U2, preferred_element_type=jnp.float32) + b_U2
    assert out2.shape == (batch2, seq_len2, d_vocab2)
    assert out2.dtype == x2.dtype
    assert jnp.allclose(out2, ref2_bf16, atol=1e-4, rtol=1e-4), \
        "Pallas output mismatch (test 2, bf16 reference)"
    assert jnp.allclose(out2, ref2_f32, atol=1e-2, rtol=1e-2), \
        "Pallas output mismatch (test 2, f32 reference)"

    print("KERNEL_OK")
</pallas_src>

<mosaic_0001>
module attributes {stable_mosaic.version = 11 : i64} {
  func.func @_unembed_kernel_fused(%arg0: i32, %arg1: i32, %arg2: memref<16x128xbf16, #tpu.memory_space<vmem>>, %arg3: memref<128x256xbf16, #tpu.memory_space<vmem>>, %arg4: memref<1x256xf32, #tpu.memory_space<vmem>>, %arg5: memref<16x256xbf16, #tpu.memory_space<vmem>>) attributes {dimension_semantics = [#tpu.dimension_semantics<parallel>, #tpu.dimension_semantics<parallel>], iteration_bounds = array<i64: 1, 1>, scalar_prefetch = 0 : i64, scratch_operands = 0 : i64, tpu.core_type = #tpu.core_type<tc>, window_params = [{transform_indices = @transform_0, window_bounds = array<i64: 16, 128>}, {transform_indices = @transform_1, window_bounds = array<i64: 128, 256>}, {transform_indices = @transform_2, window_bounds = array<i64: 1, 256>}, {transform_indices = @transform_3, window_bounds = array<i64: 16, 256>}]} {
    %c0 = arith.constant 0 : index
    %c0_0 = arith.constant 0 : index
    %0 = vector.load %arg2[%c0, %c0_0] : memref<16x128xbf16, #tpu.memory_space<vmem>>, vector<16x128xbf16>
    %c0_1 = arith.constant 0 : index
    %c0_2 = arith.constant 0 : index
    %1 = vector.load %arg3[%c0_1, %c0_2] : memref<128x256xbf16, #tpu.memory_space<vmem>>, vector<128x256xbf16>
    %cst = arith.constant dense<0.000000e+00> : vector<16x256xf32>
    %2 = tpu.matmul %0, %1, %cst {dimension_numbers = #tpu.dot_dimension_numbers<[1], [0], [0], [1], [0, 0, 1, 1], [], []>} : vector<16x128xbf16>, vector<128x256xbf16>, vector<16x256xf32> -> vector<16x256xf32>
    %c0_3 = arith.constant 0 : index
    %c0_4 = arith.constant 0 : index
    %3 = vector.load %arg4[%c0_3, %c0_4] : memref<1x256xf32, #tpu.memory_space<vmem>>, vector<1x256xf32>
    %4 = vector.broadcast %3 : vector<1x256xf32> to vector<16x256xf32>
    %5 = arith.addf %2, %4 : vector<16x256xf32>
    %6 = arith.truncf %5 : vector<16x256xf32> to vector<16x256xbf16>
    %c0_5 = arith.constant 0 : index
    %c0_6 = arith.constant 0 : index
    %7 = vector.load %arg5[%c0_5, %c0_6] : memref<16x256xbf16, #tpu.memory_space<vmem>>, vector<16x256xbf16>
    tpu.vector_store %arg5[%c0_5, %c0_6], %6 {strides = array<i32>} : memref<16x256xbf16, #tpu.memory_space<vmem>>, vector<16x256xbf16>,
    return
  }
  func.func @transform_0(%arg0: i32, %arg1: i32) -> (i32, i32) {
    %c0_i32 = arith.constant 0 : i32
    %c0_i32_0 = arith.constant 0 : i32
    return %arg0, %c0_i32 : i32, i32
  }
  func.func @transform_1(%arg0: i32, %arg1: i32) -> (i32, i32) {
    %c0_i32 = arith.constant 0 : i32
    %c0_i32_0 = arith.constant 0 : i32
    return %c0_i32, %arg1 : i32, i32
  }
  func.func @transform_2(%arg0: i32, %arg1: i32) -> (i32, i32) {
    %c0_i32 = arith.constant 0 : i32
    %c0_i32_0 = arith.constant 0 : i32
    return %c0_i32, %arg1 : i32, i32
  }
  func.func @transform_3(%arg0: i32, %arg1: i32) -> (i32, i32) {
    %c0_i32 = arith.constant 0 : i32
    return %arg0, %arg1 : i32, i32
  }
}

</mosaic_0001>

<llo_original>
// kernel: tpu_custom_call.1
$region0: #{tpu_custom_call.1}
  #allocation0 [shape = 'u32[]', space=smem, size = 0x4, offset = 0x4, fixed_abs, tag = 'smem constant byte address 0x4 - core index']
  #allocation1 [shape = 'u32[144,128]{1,0:T(1,128)}', space=vmem, size = 0x12000, scoped, tag = 'internal scratch']
  %s0 = inlined_call_operand.hbm [shape: bf16[16,128], index: 0, kind: input, shape index: {}]
  %s1 = inlined_call_operand.hbm [shape: bf16[128,256], index: 1, kind: input, shape index: {}]
  %s2 = inlined_call_operand.vmem [shape: f32[1,256], index: 2, kind: input, shape index: {}]
  %s3 = inlined_call_operand.hbm [shape: bf16[16,256], index: 3, kind: output, shape index: {}]
  %s4 = sld [smem:[#allocation0]]
  $region30: #{tpu_custom_call.1} parent=0
    _
  %s6 = ssub.s32 1, %s4
  %s7 = scalar_select 0, %s6, %s4
  $region1: #{tpu_custom_call.1} parent=0
    #allocation2 [shape = 'u8[4096]{0}', space=vmem, size = 0x1000, scoped, tag = 'input window, operand 0, single buffered']
    #allocation3 [shape = 's32[1]{0}', space=sflag, size = 0x4, scoped, tag = 'scoped memory for tpu_custom_call.1']
    #allocation4 [shape = 's32[1]{0}', space=sflag, size = 0x4, scoped, tag = 'scoped memory for tpu_custom_call.1']
    #allocation5 [shape = 'u8[65536]{0}', space=vmem, size = 0x10000, scoped, tag = 'input window, operand 1, single buffered']
    #allocation6 [shape = 's32[1]{0}', space=sflag, size = 0x4, scoped, tag = 'scoped memory for tpu_custom_call.1']
    #allocation7 [shape = 'u8[8192]{0}', space=vmem, size = 0x2000, scoped, tag = 'output window, operand 0, single buffered']
    %8 = vsyncpa [#allocation3], 0
    %9 = vsyncpa [#allocation6], 0
    %10 = vsyncpa [#allocation4], 0
    // Predicated region
    $region2: #{tpu_custom_call.1} parent=1 // pred_check
      _
    $region3: #{tpu_custom_call.1} parent=1 // pred_check_branch
      %12 = sbr.rel (0) target = $region5
    $region4: #{tpu_custom_call.1} parent=1 // pred_region
      %s14 = ssub.s32 128, 128
      %15 = vsyncadd [#allocation3], %s14
      %s16 = sshll.u32 [#allocation2], 4
      %s17 = int_to_ptr.vmem [resolvable:$true] %s16
      %22 = dma.hbm_to_vmem [thread:$0]  %s0, 128, %s17, [#allocation3], 64, 64, 4
    $region5: #{tpu_custom_call.1} parent=1 // pred_fallthru
      _
    // Predicated region
    $region6: #{tpu_custom_call.1} parent=1 // pred_check
      _
    $region7: #{tpu_custom_call.1} parent=1 // pred_check_branch
      %24 = sbr.rel (0) target = $region9
    $region8: #{tpu_custom_call.1} parent=1 // pred_region
      %s26 = ssub.s32 2048, 2048
      %27 = vsyncadd [#allocation6], %s26
      %s28 = sshll.u32 [#allocation5], 4
      %s29 = int_to_ptr.vmem [resolvable:$true] %s28
      %34 = dma.hbm_to_vmem [thread:$0]  %s1, 2048, %s29, [#allocation6], 128, 128, 8
    $region9: #{tpu_custom_call.1} parent=1 // pred_fallthru
      _
    // Predicated region
    $region10: #{tpu_custom_call.1} parent=1 // pred_check
      _
    $region11: #{tpu_custom_call.1} parent=1 // pred_check_branch
      %36 = sbr.rel (0) target = $region13
    $region12: #{tpu_custom_call.1} parent=1 // pred_region
      _
    $region13: #{tpu_custom_call.1} parent=1 // pred_fallthru
      _
    // Predicated region
    $region14: #{tpu_custom_call.1} parent=1 // pred_check
      _
    $region15: #{tpu_custom_call.1} parent=1 // pred_check_branch
      %38 = sbr.rel (0) target = $region17
    $region16: #{tpu_custom_call.1} parent=1 // pred_region
      %39 = dma.done [#allocation3], 128
    $region17: #{tpu_custom_call.1} parent=1 // pred_fallthru
      _
    // Predicated region
    $region18: #{tpu_custom_call.1} parent=1 // pred_check
      _
    $region19: #{tpu_custom_call.1} parent=1 // pred_check_branch
      %41 = sbr.rel (0) target = $region21
    $region20: #{tpu_custom_call.1} parent=1 // pred_region
      %42 = dma.done [#allocation6], 2048
    $region21: #{tpu_custom_call.1} parent=1 // pred_fallthru
      _
    %v44 = vld [vmem:[#allocation2] sm:$0xf]
    %v45 = vld [vmem:[#allocation2 + $0x4] sm:$0xf]
    %v46 = vld [vmem:[#allocation5] sm:$0xff]
    %v47 = vld [vmem:[#allocation5 + $0x8] sm:$0xff]
    %v48 = vld [vmem:[#allocation5 + $0x10] sm:$0xff]
    %v49 = vld [vmem:[#allocation5 + $0x18] sm:$0xff]
    %v50 = vld [vmem:[#allocation5 + $0x20] sm:$0xff]
    %v51 = vld [vmem:[#allocation5 + $0x28] sm:$0xff]
    %v52 = vld [vmem:[#allocation5 + $0x30] sm:$0xff]
    %v53 = vld [vmem:[#allocation5 + $0x38] sm:$0xff]
    %v54 = vld [vmem:[#allocation5 + $0x40] sm:$0xff]
    %v55 = vld [vmem:[#allocation5 + $0x48] sm:$0xff]
    %v56 = vld [vmem:[#allocation5 + $0x50] sm:$0xff]
    %v57 = vld [vmem:[#allocation5 + $0x58] sm:$0xff]
    %v58 = vld [vmem:[#allocation5 + $0x60] sm:$0xff]
    %v59 = vld [vmem:[#allocation5 + $0x68] sm:$0xff]
    %v60 = vld [vmem:[#allocation5 + $0x70] sm:$0xff]
    %v61 = vld [vmem:[#allocation5 + $0x78] sm:$0xff]
    %v62 = vld [vmem:[%s2] sm:$0x3]
    %v64 = vlaneseq
    %v65 = vshrl.u32 %v64, 7
    %v66 = vsub.s32 0, %v65
    %v67 = vrot.slane %v62, %v66
    %v68 = vlaneseq
    %v69 = vshrl.u32 %v68, 7
    %v70 = vsub.s32 1, %v69
    %v71 = vrot.slane %v62, %v70
    %v76 = vunpack.c.l.b16 %v44
    %v77 = vunpack.c.l.b16 %v45
    %v78 = vpack.c.b16 %v77, %v76
    %v96 = vunpack.c.l.b16 %v46
    %v97 = vunpack.c.h.b16 %v46
    %v98 = vunpack.c.l.b16 %v47
    %v99 = vunpack.c.h.b16 %v47
    %v100 = vunpack.c.l.b16 %v48
    %v101 = vunpack.c.h.b16 %v48
    %v102 = vunpack.c.l.b16 %v49
    %v103 = vunpack.c.h.b16 %v49
    %v104 = vunpack.c.l.b16 %v50
    %v105 = vunpack.c.h.b16 %v50
    %v106 = vunpack.c.l.b16 %v51
    %v107 = vunpack.c.h.b16 %v51
    %v108 = vunpack.c.l.b16 %v52
    %v109 = vunpack.c.h.b16 %v52
    %v110 = vunpack.c.l.b16 %v53
    %v111 = vunpack.c.h.b16 %v53
    %v112 = vunpack.c.l.b16 %v54
    %v113 = vunpack.c.h.b16 %v54
    %v114 = vunpack.c.l.b16 %v55
    %v115 = vunpack.c.h.b16 %v55
    %v116 = vunpack.c.l.b16 %v56
    %v117 = vunpack.c.h.b16 %v56
    %v118 = vunpack.c.l.b16 %v57
    %v119 = vunpack.c.h.b16 %v57
    %v120 = vunpack.c.l.b16 %v58
    %v121 = vunpack.c.h.b16 %v58
    %v122 = vunpack.c.l.b16 %v59
    %v123 = vunpack.c.h.b16 %v59
    %v124 = vunpack.c.l.b16 %v60
    %v125 = vunpack.c.h.b16 %v60
    %v126 = vunpack.c.l.b16 %v61
    %v127 = vunpack.c.h.b16 %v61
    %v128 = vpack.c.b16 %v98, %v96
    %v129 = vpack.c.b16 %v99, %v97
    %v130 = vpack.c.b16 %v102, %v100
    %v131 = vpack.c.b16 %v103, %v101
    %v132 = vpack.c.b16 %v106, %v104
    %v133 = vpack.c.b16 %v107, %v105
    %v134 = vpack.c.b16 %v110, %v108
    %v135 = vpack.c.b16 %v111, %v109
    %v136 = vpack.c.b16 %v114, %v112
    %v137 = vpack.c.b16 %v115, %v113
    %v138 = vpack.c.b16 %v118, %v116
    %v139 = vpack.c.b16 %v119, %v117
    %v140 = vpack.c.b16 %v122, %v120
    %v141 = vpack.c.b16 %v123, %v121
    %v142 = vpack.c.b16 %v126, %v124
    %v143 = vpack.c.b16 %v127, %v125
    %160 = vmatprep.subr.bf16.mxu0 %v129
    %161 = vmatpush1.bf16.msra.mxu0 %v128
    %162 = vmatprep.subr.bf16.mxu0 %v131
    %163 = vmatpush1.bf16.msra.mxu0 %v130
    %164 = vmatprep.subr.bf16.mxu0 %v133
    %165 = vmatpush1.bf16.msra.mxu0 %v132
    %166 = vmatprep.subr.bf16.mxu0 %v135
    %167 = vmatpush1.bf16.msra.mxu0 %v134
    %168 = vmatprep.subr.bf16.mxu0 %v137
    %169 = vmatpush1.bf16.msra.mxu0 %v136
    %170 = vmatprep.subr.bf16.mxu0 %v139
    %171 = vmatpush1.bf16.msra.mxu0 %v138
    %172 = vmatprep.subr.bf16.mxu0 %v141
    %173 = vmatpush1.bf16.msra.mxu0 %v140
    %174 = vmatprep.subr.bf16.mxu0 %v143
    %175 = vmatpush1.bf16.msra.mxu0 %v142
    %176 = vmatprep.subr.bf16.mxu0 0
    %177 = vmatpush1.bf16.msra.mxu0 0
    %178 = vmatprep.subr.bf16.mxu0 0
    %179 = vmatpush1.bf16.msra.mxu0 0
    %180 = vmatprep.subr.bf16.mxu0 0
    %181 = vmatpush1.bf16.msra.mxu0 0
    %182 = vmatprep.subr.bf16.mxu0 0
    %183 = vmatpush1.bf16.msra.mxu0 0
    %184 = vmatprep.subr.bf16.mxu0 0
    %185 = vmatpush1.bf16.msra.mxu0 0
    %186 = vmatprep.subr.bf16.mxu0 0
    %187 = vmatpush1.bf16.msra.mxu0 0
    %188 = vmatprep.subr.bf16.mxu0 0
    %189 = vmatpush1.bf16.msra.mxu0 0
    %190 = vmatprep.subr.bf16.mxu0 0
    %191 = vmatpush1.bf16.msra.mxu0 0
    %192 = vmatprep.mubr.bf16.mxu0 0
    %193 = vmatmul.mubr.bf16.gmra.mrb[0].mxu0 %v78
    %v194 = vpop.f32.mrb[0].mxu0
    %v195 = vadd.f32 %v67, %v194
    %v196 = vpop.f32.mrb[0].mxu0
    %v197 = vadd.f32 %v71, %v196
    %v198 = vpop.f32.mrb[0].mxu0
    %v199 = vadd.f32 %v67, %v198
    %v200 = vpop.f32.mrb[0].mxu0
    %v201 = vadd.f32 %v71, %v200
    %202 = vdwg.mxu0
    %v203 = vpack.c.bf16 %v199, %v195
    %v204 = vpack.c.bf16 %v201, %v197
    %v207 = vunpack.c.l.b16 %v203
    %v208 = vunpack.c.l.b16 %v204
    %v209 = vunpack.c.h.b16 %v203
    %v210 = vunpack.c.h.b16 %v204
    %v211 = vpack.c.b16 %v208, %v207
    %v212 = vpack.c.b16 %v210, %v209
    %215 = vst [vmem:[#allocation7] sm:$0xff] %v211
    %216 = vst [vmem:[#allocation7 + $0x8] sm:$0xff] %v212
    // Predicated region
    $region22: #{tpu_custom_call.1} parent=1 // pred_check
      _
    $region23: #{tpu_custom_call.1} parent=1 // pred_check_branch
      %218 = sbr.rel (0) target = $region25
    $region24: #{tpu_custom_call.1} parent=1 // pred_region
      %s220 = ssub.s32 256, 256
      %221 = vsyncadd [#allocation4], %s220
      %s222 = sshll.u32 [#allocation7], 4
      %s223 = int_to_ptr.vmem [resolvable:$true] %s222
      %228 = dma.vmem_to_hbm [thread:$0]  %s223, 256, %s3, [#allocation4], 128, 128, 8
    $region25: #{tpu_custom_call.1} parent=1 // pred_fallthru
      _
    // Predicated region
    $region26: #{tpu_custom_call.1} parent=1 // pred_check
      _
    $region27: #{tpu_custom_call.1} parent=1 // pred_check_branch
      %230 = sbr.rel (0) target = $region29
    $region28: #{tpu_custom_call.1} parent=1 // pred_region
      %231 = dma.done [#allocation4], 256
    $region29: #{tpu_custom_call.1} parent=1 // pred_fallthru
      _
    %232 = vsyncpa [#allocation3], 1
    %233 = vsyncpa [#allocation6], 1
    %234 = vsyncpa [#allocation4], 1

</llo_original>
